<compile_context>
chip_gen: v6e
topology: v6e:2x2x1
jax: 0.10.0
libtpu: 0.0.40
codegen_flags: <defaults>
</compile_context>

<pallas_src>
import functools
import math

import jax
import jax.numpy as jnp
from jax.experimental import pallas as pl
from jax.experimental.pallas import tpu as pltpu


def _tce_linear_kernel(x_ref, w_ref, b_ref, o_ref, *, compute_dtype):
    # x_ref: (rows_blk, G*t_cycle)   grouped segment rows (moves with the grid)
    # w_ref: (G*t_cycle, G*d_model)  block-diagonal weight (resident, 1 buffer)
    # b_ref: (1, G*d_model)          tiled bias            (resident, 1 buffer)
    # o_ref: (rows_blk, G*d_model)
    x = x_ref[...]
    w = w_ref[...]
    if compute_dtype is not None:           # optional bf16 MXU path (v5e/v7x tip)
        x = x.astype(compute_dtype)
        w = w.astype(compute_dtype)
    acc = jnp.dot(x, w, preferred_element_type=jnp.float32)
    o_ref[...] = (acc + b_ref[...].astype(jnp.float32)).astype(o_ref.dtype)


def _round_up(a, b):
    return ((a + b - 1) // b) * b


def _cdiv(a, b):
    return (a + b - 1) // b


def _sublane_multiple(dtype):
    # (8,128) tiles for 32-bit, (16,128) for 16-bit, (32,128) for 8-bit dtypes.
    return max(8, 32 // jnp.dtype(dtype).itemsize)


def _choose_group(t_cycle, d_model, itemsize, max_w_bytes=2 << 20):
    """Row-grouping factor G for lane-dense loads/stores (W_big capped at ~2 MiB)."""
    g_out = 128 // math.gcd(128, d_model)   # G*d_model % 128 == 0 (dense stores)
    g_in = 128 // math.gcd(128, t_cycle)    # G*t_cycle % 128 == 0 (dense loads)
    g_both = (g_out * g_in) // math.gcd(g_out, g_in)
    for cand in (g_both, g_out, 1):
        if cand * t_cycle * cand * d_model * itemsize <= max_w_bytes:
            return cand
    return 1


def tce_embedding(x, weight, bias, t_cycle, *, block_m=32768, group=None,
                  out_dtype=None, compute_dtype=None, vmem_tile_budget=24 << 20):
    """x: (batch, ts_len, ts_dim); weight: (d_model, t_cycle) [PyTorch layout]; bias: (d_model,)."""
    batch, ts_len, ts_dim = x.shape
    assert ts_len % t_cycle == 0, "ts_len must be divisible by t_cycle"
    assert weight.shape[1] == t_cycle, "weight must be (d_model, t_cycle)"
    cycle_num = ts_len // t_cycle
    d_model = weight.shape[0]
    M = batch * ts_dim * cycle_num

    out_dt = jnp.dtype(out_dtype) if out_dtype is not None else jnp.dtype(x.dtype)
    x_item = jnp.dtype(x.dtype).itemsize
    w_item = jnp.dtype(weight.dtype).itemsize
    o_item = out_dt.itemsize

    G = group if group is not None else _choose_group(t_cycle, d_model, max(x_item, w_item))
    sub = max(_sublane_multiple(x.dtype), _sublane_multiple(out_dt))
    row_unit = sub * G                       # dtype-aware second-minor tile unit

    # Resident-operand footprint (worst case: double-buffered if the single-buffer
    # hint is unavailable) and per-row streaming bytes.
    w_bytes = (G * t_cycle) * (G * d_model) * w_item
    b_bytes = (G * d_model) * jnp.dtype(bias.dtype).itemsize
    const_bytes = 2 * (w_bytes + b_bytes)
    bytes_per_row = t_cycle * x_item + d_model * o_item

    # Cap the row tile so 2x(x tile + out tile) + constants fit the VMEM budget
    # (conservative across v5e 16 MiB-scoped / v7x 64 MiB-physical generations).
    max_rows = max(row_unit,
                   ((vmem_tile_budget - const_bytes) // (2 * bytes_per_row)) // row_unit * row_unit)
    block_m_eff = max(row_unit, min(block_m, max_rows))

    # Grid-first derivation: padding bounded by ~row_unit per step, not block_m;
    # even grid so v7x's two TensorCores both get work (no-op on v5e/v6e).
    grid_m = max(1, _cdiv(M, block_m_eff))
    if grid_m % 2 == 1 and M > row_unit:
        grid_m += 1
    tm = _round_up(_cdiv(M, grid_m), row_unit)
    m_pad = tm * grid_m
    rows_blk = tm // G

    # rearrange 'b (c t) d -> (b d c) t' == swap last two axes + free row-major reshape.
    # TODO(synk): verify in the HLO that allow_input_fusion folds this transpose/pad
    # into the pallas_call operand; if not, feed x upstream in (b, d, ts_len) layout
    # to avoid one extra HBM pass over x (~+40% traffic at t_cycle=8, d_model=32).
    x_seg = jnp.swapaxes(x, 1, 2).reshape(M, t_cycle)
    if m_pad != M:
        x_seg = jnp.pad(x_seg, ((0, m_pad - M), (0, 0)))
    x_g = x_seg.reshape(m_pad // G, G * t_cycle)             # free row-major view

    w_t = jnp.transpose(weight)                               # (t_cycle, d_model)
    w_big = jnp.kron(jnp.eye(G, dtype=w_t.dtype), w_t)        # (G*t_cycle, G*d_model)
    b_big = jnp.tile(bias, G).reshape(1, G * d_model)

    vmem_needed = 2 * tm * bytes_per_row + const_bytes
    vmem_limit = int(min(64 << 20, max(vmem_needed + (4 << 20), 16 << 20)))

    kernel = functools.partial(_tce_linear_kernel, compute_dtype=compute_dtype)
    out_shape = jax.ShapeDtypeStruct((m_pad // G, G * d_model), out_dt)
    compiler_params = pltpu.CompilerParams(
        dimension_semantics=("parallel",),
        allow_input_fusion=[True, False, False],
        vmem_limit_bytes=vmem_limit,
    )

    def _call(single_buffer_consts):
        const_kw = dict(pipeline_mode=pl.Buffered(1)) if single_buffer_consts else {}
        return pl.pallas_call(
            kernel,
            out_shape=out_shape,
            grid=(grid_m,),
            in_specs=[
                pl.BlockSpec((rows_blk, G * t_cycle), lambda i: (i, 0)),
                pl.BlockSpec((G * t_cycle, G * d_model), lambda i: (0, 0), **const_kw),
                pl.BlockSpec((1, G * d_model), lambda i: (0, 0), **const_kw),
            ],
            out_specs=pl.BlockSpec((rows_blk, G * d_model), lambda i: (i, 0)),
            compiler_params=compiler_params,
        )(x_g, w_big, b_big)

    try:
        out_g = _call(True)      # grid-invariant W/bias single-buffered (saves VMEM)
    except Exception:
        out_g = _call(False)     # identical kernel, default double-buffering

    out_flat = out_g.reshape(m_pad, d_model)
    if m_pad != M:
        out_flat = out_flat[:M]
    # '(b d c) m -> b d c m' is a free row-major reshape.
    return out_flat.reshape(batch, ts_dim, cycle_num, d_model)


def tce_embedding_ref(x, weight, bias, t_cycle):
    """Pure-JAX reference mirroring the PyTorch module (full-precision matmul)."""
    batch, ts_len, ts_dim = x.shape
    cycle_num = ts_len // t_cycle
    d_model = weight.shape[0]
    x_seg = jnp.swapaxes(x, 1, 2).reshape(batch * ts_dim * cycle_num, t_cycle)
    y = jnp.dot(x_seg, weight.T, precision=jax.lax.Precision.HIGHEST) + bias
    return y.reshape(batch, ts_dim, cycle_num, d_model)


if __name__ == "__main__":
    # Small shapes consistent with the module: batch=2, ts_dim=7, t_cycle=8,
    # cycle_num=32 (ts_len=256), d_model=32.  M = 448 segment rows.
    batch, ts_dim = 2, 7
    t_cycle, cycle_num = 8, 32
    ts_len = t_cycle * cycle_num
    d_model = 32

    key = jax.random.PRNGKey(0)
    kx, kw, kb = jax.random.split(key, 3)

    # Round demo inputs/params to bf16-representable f32 values so the numeric
    # check is insensitive to the MXU's f32-vs-bf16-pass policy.
    def _bf16_repr(a):
        return a.astype(jnp.bfloat16).astype(jnp.float32)

    x = _bf16_repr(jax.random.normal(kx, (batch, ts_len, ts_dim), dtype=jnp.float32))
    bound = 1.0 / (t_cycle ** 0.5)
    weight = _bf16_repr(jax.random.uniform(kw, (d_model, t_cycle), jnp.float32, -bound, bound))
    bias = _bf16_repr(jax.random.uniform(kb, (d_model,), jnp.float32, -bound, bound))

    # Default block_m (32K) >> M here, so the grid-first derivation produces an
    # even grid=(2,) with 256-row tiles and only 64 pad rows (tail-padding path).
    out = tce_embedding(x, weight, bias, t_cycle)
    out = jax.block_until_ready(out)

    ref = tce_embedding_ref(x, weight, bias, t_cycle)
    assert out.shape == (batch, ts_dim, cycle_num, d_model), out.shape
    assert jnp.allclose(out, ref, atol=1e-4, rtol=1e-4), "mismatch vs reference"

    print("KERNEL_OK")
</pallas_src>

<mosaic_0001>
module attributes {stable_mosaic.version = 11 : i64} {
  func.func @_tce_linear_kernel(%arg0: i32, %arg1: memref<16x128xf32, #tpu.memory_space<vmem>>, %arg2: memref<128x512xf32, #tpu.memory_space<vmem>>, %arg3: memref<1x512xf32, #tpu.memory_space<vmem>>, %arg4: memref<16x512xf32, #tpu.memory_space<vmem>>) attributes {dimension_semantics = [#tpu.dimension_semantics<parallel>], iteration_bounds = array<i64: 2>, scalar_prefetch = 0 : i64, scratch_operands = 0 : i64, tpu.core_type = #tpu.core_type<tc>, window_params = [{transform_indices = @transform_0, window_bounds = array<i64: 16, 128>}, {pipeline_mode = #tpu.pipeline_mode<synchronous>, transform_indices = @transform_1, window_bounds = array<i64: 128, 512>}, {pipeline_mode = #tpu.pipeline_mode<synchronous>, transform_indices = @transform_2, window_bounds = array<i64: 1, 512>}, {transform_indices = @transform_3, window_bounds = array<i64: 16, 512>}]} {
    %c0 = arith.constant 0 : index
    %c0_0 = arith.constant 0 : index
    %0 = vector.load %arg1[%c0, %c0_0] : memref<16x128xf32, #tpu.memory_space<vmem>>, vector<16x128xf32>
    %c0_1 = arith.constant 0 : index
    %c0_2 = arith.constant 0 : index
    %1 = vector.load %arg2[%c0_1, %c0_2] : memref<128x512xf32, #tpu.memory_space<vmem>>, vector<128x512xf32>
    %cst = arith.constant dense<0.000000e+00> : vector<16x512xf32>
    %2 = tpu.matmul %0, %1, %cst {dimension_numbers = #tpu.dot_dimension_numbers<[1], [0], [0], [1], [0, 0, 1, 1], [], []>} : vector<16x128xf32>, vector<128x512xf32>, vector<16x512xf32> -> vector<16x512xf32>
    %c0_3 = arith.constant 0 : index
    %c0_4 = arith.constant 0 : index
    %3 = vector.load %arg3[%c0_3, %c0_4] : memref<1x512xf32, #tpu.memory_space<vmem>>, vector<1x512xf32>
    %4 = vector.broadcast %3 : vector<1x512xf32> to vector<16x512xf32>
    %5 = arith.addf %2, %4 : vector<16x512xf32>
    %c0_5 = arith.constant 0 : index
    %c0_6 = arith.constant 0 : index
    %6 = vector.load %arg4[%c0_5, %c0_6] : memref<16x512xf32, #tpu.memory_space<vmem>>, vector<16x512xf32>
    tpu.vector_store %arg4[%c0_5, %c0_6], %5 {strides = array<i32>} : memref<16x512xf32, #tpu.memory_space<vmem>>, vector<16x512xf32>,
    return
  }
  func.func @transform_0(%arg0: i32) -> (i32, i32) {
    %c0_i32 = arith.constant 0 : i32
    %c0_i32_0 = arith.constant 0 : i32
    return %arg0, %c0_i32 : i32, i32
  }
  func.func @transform_1(%arg0: i32) -> (i32, i32) {
    %c0_i32 = arith.constant 0 : i32
    %c0_i32_0 = arith.constant 0 : i32
    %c0_i32_1 = arith.constant 0 : i32
    return %c0_i32, %c0_i32_0 : i32, i32
  }
  func.func @transform_2(%arg0: i32) -> (i32, i32) {
    %c0_i32 = arith.constant 0 : i32
    %c0_i32_0 = arith.constant 0 : i32
    %c0_i32_1 = arith.constant 0 : i32
    return %c0_i32, %c0_i32_0 : i32, i32
  }
  func.func @transform_3(%arg0: i32) -> (i32, i32) {
    %c0_i32 = arith.constant 0 : i32
    %c0_i32_0 = arith.constant 0 : i32
    return %arg0, %c0_i32 : i32, i32
  }
}

module attributes {stable_mosaic.version = 11 : i64} {
  func.func @_tce_linear_kernel(%arg0: i32, %arg1: memref<16x128xf32, #tpu.memory_space<vmem>>, %arg2: memref<128x512xf32, #tpu.memory_space<vmem>>, %arg3: memref<1x512xf32, #tpu.memory_space<vmem>>, %arg4: memref<16x512xf32, #tpu.memory_space<vmem>>) attributes {dimension_semantics = [#tpu.dimension_semantics<parallel>], iteration_bounds = array<i64: 2>, scalar_prefetch = 0 : i64, scratch_operands = 0 : i64, tpu.core_type = #tpu.core_type<tc>, window_params = [{transform_indices = @transform_0, window_bounds = array<i64: 16, 128>}, {pipeline_mode = #tpu.pipeline_mode<synchronous>, transform_indices = @transform_1, window_bounds = array<i64: 128, 512>}, {pipeline_mode = #tpu.pipeline_mode<synchronous>, transform_indices = @transform_2, window_bounds = array<i64: 1, 512>}, {transform_indices = @transform_3, window_bounds = array<i64: 16, 512>}]} {
    %c0 = arith.constant 0 : index
    %c0_0 = arith.constant 0 : index
    %0 = vector.load %arg1[%c0, %c0_0] : memref<16x128xf32, #tpu.memory_space<vmem>>, vector<16x128xf32>
    %c0_1 = arith.constant 0 : index
    %c0_2 = arith.constant 0 : index
    %1 = vector.load %arg2[%c0_1, %c0_2] : memref<128x512xf32, #tpu.memory_space<vmem>>, vector<128x512xf32>
    %cst = arith.constant dense<0.000000e+00> : vector<16x512xf32>
    %2 = tpu.matmul %0, %1, %cst {dimension_numbers = #tpu.dot_dimension_numbers<[1], [0], [0], [1], [0, 0, 1, 1], [], []>} : vector<16x128xf32>, vector<128x512xf32>, vector<16x512xf32> -> vector<16x512xf32>
    %c0_3 = arith.constant 0 : index
    %c0_4 = arith.constant 0 : index
    %3 = vector.load %arg3[%c0_3, %c0_4] : memref<1x512xf32, #tpu.memory_space<vmem>>, vector<1x512xf32>
    %4 = vector.broadcast %3 : vector<1x512xf32> to vector<16x512xf32>
    %5 = arith.addf %2, %4 : vector<16x512xf32>
    %c0_5 = arith.constant 0 : index
    %c0_6 = arith.constant 0 : index
    %6 = vector.load %arg4[%c0_5, %c0_6] : memref<16x512xf32, #tpu.memory_space<vmem>>, vector<16x512xf32>
    tpu.vector_store %arg4[%c0_5, %c0_6], %5 {strides = array<i32>} : memref<16x512xf32, #tpu.memory_space<vmem>>, vector<16x512xf32>,
    return
  }
  func.func @transform_0(%arg0: i32) -> (i32, i32) {
    %c0_i32 = arith.constant 0 : i32
    %c0_i32_0 = arith.constant 0 : i32
    return %arg0, %c0_i32 : i32, i32
  }
  func.func @transform_1(%arg0: i32) -> (i32, i32) {
    %c0_i32 = arith.constant 0 : i32
    %c0_i32_0 = arith.constant 0 : i32
    %c0_i32_1 = arith.constant 0 : i32
    return %c0_i32, %c0_i32_0 : i32, i32
  }
  func.func @transform_2(%arg0: i32) -> (i32, i32) {
    %c0_i32 = arith.constant 0 : i32
    %c0_i32_0 = arith.constant 0 : i32
    %c0_i32_1 = arith.constant 0 : i32
    return %c0_i32, %c0_i32_0 : i32, i32
  }
  func.func @transform_3(%arg0: i32) -> (i32, i32) {
    %c0_i32 = arith.constant 0 : i32
    %c0_i32_0 = arith.constant 0 : i32
    return %arg0, %c0_i32 : i32, i32
  }
}

</mosaic_0001>

<llo_original>
// kernel: tpu_custom_call.1
$region0: #{tpu_custom_call.1}
  #allocation0 [shape = 'u32[]', space=smem, size = 0x4, offset = 0x4, fixed_abs, tag = 'smem constant byte address 0x4 - core index']
  #allocation1 [shape = 'u32[144,128]{1,0:T(1,128)}', space=vmem, size = 0x12000, scoped, tag = 'internal scratch']
  %s0 = inlined_call_operand.hbm [shape: f32[32,128], index: 0, kind: input, shape index: {}]
  %s1 = inlined_call_operand.hbm [shape: f32[128,512], index: 1, kind: input, shape index: {}]
  %s2 = inlined_call_operand.hbm [shape: f32[1,512], index: 2, kind: input, shape index: {}]
  %s3 = inlined_call_operand.hbm [shape: f32[32,512], index: 3, kind: output, shape index: {}]
  %s4 = sld [smem:[#allocation0]]
  $region57: #{tpu_custom_call.1} parent=0
    _
  %s6 = ssub.s32 1, %s4
  %s7 = scalar_select 0, %s6, %s4
  $region1: #{tpu_custom_call.1} parent=0
    #allocation2 [shape = 'u8[16384]{0}', space=vmem, size = 0x4000, scoped, tag = 'input window, operand 0']
    #allocation3 [shape = 's32[2]{0}', space=sflag, size = 0x8, scoped, tag = 'scoped memory for tpu_custom_call.1']
    #allocation4 [shape = 's32[2]{0}', space=sflag, size = 0x8, scoped, tag = 'scoped memory for tpu_custom_call.1']
    #allocation5 [shape = 'u8[262144]{0}', space=vmem, size = 0x40000, scoped, tag = 'input window, operand 1, single buffered']
    #allocation6 [shape = 's32[1]{0}', space=sflag, size = 0x4, scoped, tag = 'scoped memory for tpu_custom_call.1']
    #allocation7 [shape = 'u8[2048]{0}', space=vmem, size = 0x800, scoped, tag = 'input window, operand 2, single buffered']
    #allocation8 [shape = 'u8[65536]{0}', space=vmem, size = 0x10000, scoped, tag = 'output window, operand 0']
    %8 = vsyncpa [#allocation3], 0
    %s9 = scalar_lea.sflag [#allocation3], 1
    %10 = vsyncpa %s9, 0
    %11 = vsyncpa [#allocation6], 0
    %12 = vsyncpa [#allocation4], 0
    %s13 = scalar_lea.sflag [#allocation4], 1
    %14 = vsyncpa %s13, 0
    loop: start=0, step=1, limit=4
    $region2: #{tpu_custom_call.1} parent=1 // loop_pre_header
      _
    $region3: #{tpu_custom_call.1} parent=1 // loop_header
      %s16 = sphi 0, %s20
      %p17 = scmp.ge.s32.totalorder %s16, 4
      %s26 = sphi 0, %s28
      %s29 = sphi 0, %s26
      %s30 = sphi 0, %s29
      %s46 = sphi 0, %s30
      %s50 = sphi 0, %s50
      %s52 = sphi 0, %s50
      %s53 = sphi 0, %s52
      %s67 = sphi 0, %s53
      %s71 = sphi 0, %s71
      %s73 = sphi 0, %s71
      %s74 = sphi 0, %s73
      %s88 = sphi 0, %s74
      %s94 = sphi 0, %s96
      %s97 = sphi 0, %s94
      %s98 = sphi 0, %s97
      %s114 = sphi 0, %s98
    $region4: #{tpu_custom_call.1} parent=1 // loop_header_branch
      %19 = sbr.rel (%p17) target = $region8
    $region5: #{tpu_custom_call.1} parent=1 // loop_body
      %s21 = ssub.s32 %s16, 1
      %s22 = ssub.s32 %s16, 2
      %s23 = sadd.s32 %s16, 1
      %s24 = ssub.s32 %s16, %s23
      %p25 = scmp.eq.s32.totalorder %s24, 0
      %s27 = sadd.s32 %s26, 1
      %s28 = scalar_select %p25, %s26, %s27
      %p31 = pneg %p25
      %p32 = scmp.eq.s32.totalorder %s16, 1
      %p33 = por %p31, %p32
      %p34 = scmp.ne.s32.totalorder %s26, %s29
      %p35 = scmp.eq.s32.totalorder %s16, 0
      %p36 = por %p34, %p35
      %p37 = scmp.ne.s32.totalorder %s26, %s29
      %p38 = scmp.eq.s32.totalorder %s21, 1
      %p39 = por %p37, %p38
      %p40 = scmp.ne.s32.totalorder %s29, %s30
      %p41 = scmp.eq.s32.totalorder %s21, 0
      %p42 = por %p40, %p41
      %p43 = scmp.ne.s32.totalorder %s29, %s30
      %p44 = scmp.eq.s32.totalorder %s22, 1
      %p45 = por %p43, %p44
      %p47 = scmp.ne.s32.totalorder %s30, %s46
      %p48 = scmp.eq.s32.totalorder %s22, 0
      %p49 = por %p47, %p48
      %s51 = sadd.s32 %s50, 1
      %p54 = scmp.eq.s32.totalorder %s16, 1
      %p55 = scmp.ne.s32.totalorder %s50, %s52
      %p56 = scmp.eq.s32.totalorder %s16, 0
      %p57 = por %p55, %p56
      %p58 = scmp.ne.s32.totalorder %s50, %s52
      %p59 = scmp.eq.s32.totalorder %s21, 1
      %p60 = por %p58, %p59
      %p61 = scmp.ne.s32.totalorder %s52, %s53
      %p62 = scmp.eq.s32.totalorder %s21, 0
      %p63 = por %p61, %p62
      %p64 = scmp.ne.s32.totalorder %s52, %s53
      %p65 = scmp.eq.s32.totalorder %s22, 1
      %p66 = por %p64, %p65
      %p68 = scmp.ne.s32.totalorder %s53, %s67
      %p69 = scmp.eq.s32.totalorder %s22, 0
      %p70 = por %p68, %p69
      %s72 = sadd.s32 %s71, 1
      %p75 = scmp.eq.s32.totalorder %s16, 1
      %p76 = scmp.ne.s32.totalorder %s71, %s73
      %p77 = scmp.eq.s32.totalorder %s16, 0
      %p78 = por %p76, %p77
      %p79 = scmp.ne.s32.totalorder %s71, %s73
      %p80 = scmp.eq.s32.totalorder %s21, 1
      %p81 = por %p79, %p80
      %p82 = scmp.ne.s32.totalorder %s73, %s74
      %p83 = scmp.eq.s32.totalorder %s21, 0
      %p84 = por %p82, %p83
      %p85 = scmp.ne.s32.totalorder %s73, %s74
      %p86 = scmp.eq.s32.totalorder %s22, 1
      %p87 = por %p85, %p86
      %p89 = scmp.ne.s32.totalorder %s74, %s88
      %p90 = scmp.eq.s32.totalorder %s22, 0
      %p91 = por %p89, %p90
      %s92 = ssub.s32 %s16, %s23
      %p93 = scmp.eq.s32.totalorder %s92, 0
      %s95 = sadd.s32 %s94, 1
      %s96 = scalar_select %p93, %s94, %s95
      %p99 = pneg %p93
      %p100 = scmp.eq.s32.totalorder %s16, 1
      %p101 = por %p99, %p100
      %p102 = scmp.ne.s32.totalorder %s94, %s97
      %p103 = scmp.eq.s32.totalorder %s16, 0
      %p104 = por %p102, %p103
      %p105 = scmp.ne.s32.totalorder %s94, %s97
      %p106 = scmp.eq.s32.totalorder %s21, 1
      %p107 = por %p105, %p106
      %p108 = scmp.ne.s32.totalorder %s97, %s98
      %p109 = scmp.eq.s32.totalorder %s21, 0
      %p110 = por %p108, %p109
      %p111 = scmp.ne.s32.totalorder %s97, %s98
      %p112 = scmp.eq.s32.totalorder %s22, 1
      %p113 = por %p111, %p112
      %p115 = scmp.ne.s32.totalorder %s98, %s114
      %p116 = scmp.eq.s32.totalorder %s22, 0
      %p117 = por %p115, %p116
      %p118 = scmp.le.s32.totalorder 1, %s16
      %p119 = scmp.lt.s32.totalorder %s16, 3
      %p120 = pnand %p118, %p119
      %p121 = pneg %p120
      // Predicated region
      $region9: #{tpu_custom_call.1} parent=5 // pred_check
        _
      $region10: #{tpu_custom_call.1} parent=5 // pred_check_branch
        %123 = sbr.rel (%p120) target = $region12
      $region11: #{tpu_custom_call.1} parent=5 // pred_region
        %s124 = ssub.s32 %s16, 1
        // Predicated region
        $region13: #{tpu_custom_call.1} parent=11 // pred_check
          %p125 = pneg %p63
        $region14: #{tpu_custom_call.1} parent=11 // pred_check_branch
          %127 = sbr.rel (%p125) target = $region16
        $region15: #{tpu_custom_call.1} parent=11 // pred_region
          %s129 = ssub.s32 8192, 8192
          %130 = vsyncadd [#allocation6], %s129
          %s131 = sshll.u32 [#allocation5], 4
          %s132 = int_to_ptr.vmem [resolvable:$true] %s131
          %137 = dma.hbm_to_vmem [thread:$0]  %s1, 8192, %s132, [#allocation6], 512, 512, 32
        $region16: #{tpu_custom_call.1} parent=11 // pred_fallthru
          _
        // Predicated region
        $region17: #{tpu_custom_call.1} parent=11 // pred_check
          %p138 = pneg %p84
        $region18: #{tpu_custom_call.1} parent=11 // pred_check_branch
          %140 = sbr.rel (%p138) target = $region20
        $region19: #{tpu_custom_call.1} parent=11 // pred_region
          %s142 = ssub.s32 64, 64
          %143 = vsyncadd [#allocation6], %s142
          %s145 = sshll.u32 [#allocation7], 4
          %s146 = int_to_ptr.vmem [resolvable:$true] %s145
          %148 = dma.hbm_to_vmem [thread:$0]  %s2, 64, %s146, [#allocation6]
        $region20: #{tpu_custom_call.1} parent=11 // pred_fallthru
          _
      $region12: #{tpu_custom_call.1} parent=5 // pred_fallthru
        _
      %p149 = scmp.lt.s32.totalorder %s16, 2
      // Predicated region
      $region21: #{tpu_custom_call.1} parent=5 // pred_check
        %p150 = pneg %p149
      $region22: #{tpu_custom_call.1} parent=5 // pred_check_branch
        %152 = sbr.rel (%p150) target = $region24
      $region23: #{tpu_custom_call.1} parent=5 // pred_region
        // Predicated region
        $region25: #{tpu_custom_call.1} parent=23 // pred_check
          %p153 = pneg %p36
        $region26: #{tpu_custom_call.1} parent=23 // pred_check_branch
          %155 = sbr.rel (%p153) target = $region28
        $region27: #{tpu_custom_call.1} parent=23 // pred_region
          %s156 = sand.u32 %s26, 1
          %s157 = scalar_lea.sflag [#allocation3], %s156
          %s158 = sand.u32 %s26, 1
          %s159 = smul.addr %s158, 16
          %s160 = scalar_lea.vmem [#allocation2], %s159
          %s161 = smul.u32 2, %s16
          %s163 = ssub.s32 256, 256
          %164 = vsyncadd %s157, %s163
          %s165 = smul.addr %s161, 128
          %s166 = scalar_lea.hbm %s0, %s165
          %s167 = sshll.u32 %s160, 4
          %s168 = int_to_ptr.vmem [resolvable:$true] %s167
          %173 = dma.hbm_to_vmem [thread:$0]  %s166, 256, %s168, %s157, 128, 128, 8
        $region28: #{tpu_custom_call.1} parent=23 // pred_fallthru
          _
      $region24: #{tpu_custom_call.1} parent=5 // pred_fallthru
        _
      %p174 = scmp.le.s32.totalorder 1, %s16
      %p175 = scmp.lt.s32.totalorder %s16, 3
      %p176 = pnand %p174, %p175
      %p177 = pneg %p176
      // Predicated region
      $region29: #{tpu_custom_call.1} parent=5 // pred_check
        _
      $region30: #{tpu_custom_call.1} parent=5 // pred_check_branch
        %179 = sbr.rel (%p176) target = $region32
      $region31: #{tpu_custom_call.1} parent=5 // pred_region
        %s180 = ssub.s32 %s16, 1
        %s181 = sand.u32 %s29, 1
        %s182 = scalar_lea.sflag [#allocation3], %s181
        %s183 = sand.u32 %s29, 1
        %s184 = smul.addr %s183, 16
        %s185 = scalar_lea.vmem [#allocation2], %s184
        // Predicated region
        $region33: #{tpu_custom_call.1} parent=31 // pred_check
          %p186 = pneg %p42
        $region34: #{tpu_custom_call.1} parent=31 // pred_check_branch
          %188 = sbr.rel (%p186) target = $region36
        $region35: #{tpu_custom_call.1} parent=31 // pred_region
          %189 = dma.done %s182, 256
        $region36: #{tpu_custom_call.1} parent=31 // pred_fallthru
          _
        // Predicated region
        $region37: #{tpu_custom_call.1} parent=31 // pred_check
          %p190 = pneg %p63
        $region38: #{tpu_custom_call.1} parent=31 // pred_check_branch
          %192 = sbr.rel (%p190) target = $region40
        $region39: #{tpu_custom_call.1} parent=31 // pred_region
          %193 = dma.done [#allocation6], 8192
        $region40: #{tpu_custom_call.1} parent=31 // pred_fallthru
          _
        // Predicated region
        $region41: #{tpu_custom_call.1} parent=31 // pred_check
          %p194 = pneg %p84
        $region42: #{tpu_custom_call.1} parent=31 // pred_check_branch
          %196 = sbr.rel (%p194) target = $region44
        $region43: #{tpu_custom_call.1} parent=31 // pred_region
          %197 = dma.done [#allocation6], 64
        $region44: #{tpu_custom_call.1} parent=31 // pred_fallthru
          _
        %s198 = sand.u32 %s29, 1
        %s199 = scalar_lea.sflag [#allocation3], %s198
        %s200 = sand.u32 %s29, 1
        %s201 = smul.addr %s200, 16
        %s202 = scalar_lea.vmem [#allocation2], %s201
        %p203 = pneg %p42
        %p204 = pneg %p39
        %p205 = pneg %p63
        %p206 = pneg %p60
        %p207 = pneg %p84
        %p208 = pneg %p81
        %p209 = pneg %p110
        %p210 = pneg %p107
        %s211 = sand.u32 %s97, 1
        %s212 = scalar_lea.sflag [#allocation4], %s211
        %s213 = sand.u32 %s97, 1
        %s214 = smul.addr %s213, 64
        %s215 = scalar_lea.vmem [#allocation8], %s214
        %s216 = smul.u32 2, %s21
        %s217 = smul.u32 2, %s21
        %v218 = vld [vmem:[%s185] sm:$0xff]
        %v219 = vld [vmem:[%s185 + $0x8] sm:$0xff]
        %v220 = vld [vmem:[#allocation5] sm:$0xff]
        %v221 = vld [vmem:[#allocation5 + $0x8] sm:$0xff]
        %v222 = vld [vmem:[#allocation5 + $0x10] sm:$0xff]
        %v223 = vld [vmem:[#allocation5 + $0x18] sm:$0xff]
        %v224 = vld [vmem:[#allocation5 + $0x20] sm:$0xff]
        %v225 = vld [vmem:[#allocation5 + $0x28] sm:$0xff]
        %v226 = vld [vmem:[#allocation5 + $0x30] sm:$0xff]
        %v227 = vld [vmem:[#allocation5 + $0x38] sm:$0xff]
        %v228 = vld [vmem:[#allocation5 + $0x40] sm:$0xff]
        %v229 = vld [vmem:[#allocation5 + $0x48] sm:$0xff]
        %v230 = vld [vmem:[#allocation5 + $0x50] sm:$0xff]
        %v231 = vld [vmem:[#allocation5 + $0x58] sm:$0xff]
        %v232 = vld [vmem:[#allocation5 + $0x60] sm:$0xff]
        %v233 = vld [vmem:[#allocation5 + $0x68] sm:$0xff]
        %v234 = vld [vmem:[#allocation5 + $0x70] sm:$0xff]
        %v235 = vld [vmem:[#allocation5 + $0x78] sm:$0xff]
        %v236 = vld [vmem:[#allocation5 + $0x80] sm:$0xff]
        %v237 = vld [vmem:[#allocation5 + $0x88] sm:$0xff]
        %v238 = vld [vmem:[#allocation5 + $0x90] sm:$0xff]
        %v239 = vld [vmem:[#allocation5 + $0x98] sm:$0xff]
        %v240 = vld [vmem:[#allocation5 + $0xa0] sm:$0xff]
        %v241 = vld [vmem:[#allocation5 + $0xa8] sm:$0xff]
        %v242 = vld [vmem:[#allocation5 + $0xb0] sm:$0xff]
        %v243 = vld [vmem:[#allocation5 + $0xb8] sm:$0xff]
        %v244 = vld [vmem:[#allocation5 + $0xc0] sm:$0xff]
        %v245 = vld [vmem:[#allocation5 + $0xc8] sm:$0xff]
        %v246 = vld [vmem:[#allocation5 + $0xd0] sm:$0xff]
        %v247 = vld [vmem:[#allocation5 + $0xd8] sm:$0xff]
        %v248 = vld [vmem:[#allocation5 + $0xe0] sm:$0xff]
        %v249 = vld [vmem:[#allocation5 + $0xe8] sm:$0xff]
        %v250 = vld [vmem:[#allocation5 + $0xf0] sm:$0xff]
        %v251 = vld [vmem:[#allocation5 + $0xf8] sm:$0xff]
        %v252 = vld [vmem:[#allocation5 + $0x100] sm:$0xff]
        %v253 = vld [vmem:[#allocation5 + $0x108] sm:$0xff]
        %v254 = vld [vmem:[#allocation5 + $0x110] sm:$0xff]
        %v255 = vld [vmem:[#allocation5 + $0x118] sm:$0xff]
        %v256 = vld [vmem:[#allocation5 + $0x120] sm:$0xff]
        %v257 = vld [vmem:[#allocation5 + $0x128] sm:$0xff]
        %v258 = vld [vmem:[#allocation5 + $0x130] sm:$0xff]
        %v259 = vld [vmem:[#allocation5 + $0x138] sm:$0xff]
        %v260 = vld [vmem:[#allocation5 + $0x140] sm:$0xff]
        %v261 = vld [vmem:[#allocation5 + $0x148] sm:$0xff]
        %v262 = vld [vmem:[#allocation5 + $0x150] sm:$0xff]
        %v263 = vld [vmem:[#allocation5 + $0x158] sm:$0xff]
        %v264 = vld [vmem:[#allocation5 + $0x160] sm:$0xff]
        %v265 = vld [vmem:[#allocation5 + $0x168] sm:$0xff]
        %v266 = vld [vmem:[#allocation5 + $0x170] sm:$0xff]
        %v267 = vld [vmem:[#allocation5 + $0x178] sm:$0xff]
        %v268 = vld [vmem:[#allocation5 + $0x180] sm:$0xff]
        %v269 = vld [vmem:[#allocation5 + $0x188] sm:$0xff]
        %v270 = vld [vmem:[#allocation5 + $0x190] sm:$0xff]
        %v271 = vld [vmem:[#allocation5 + $0x198] sm:$0xff]
        %v272 = vld [vmem:[#allocation5 + $0x1a0] sm:$0xff]
        %v273 = vld [vmem:[#allocation5 + $0x1a8] sm:$0xff]
        %v274 = vld [vmem:[#allocation5 + $0x1b0] sm:$0xff]
        %v275 = vld [vmem:[#allocation5 + $0x1b8] sm:$0xff]
        %v276 = vld [vmem:[#allocation5 + $0x1c0] sm:$0xff]
        %v277 = vld [vmem:[#allocation5 + $0x1c8] sm:$0xff]
        %v278 = vld [vmem:[#allocation5 + $0x1d0] sm:$0xff]
        %v279 = vld [vmem:[#allocation5 + $0x1d8] sm:$0xff]
        %v280 = vld [vmem:[#allocation5 + $0x1e0] sm:$0xff]
        %v281 = vld [vmem:[#allocation5 + $0x1e8] sm:$0xff]
        %v282 = vld [vmem:[#allocation5 + $0x1f0] sm:$0xff]
        %v283 = vld [vmem:[#allocation5 + $0x1f8] sm:$0xff]
        %v284 = vld [vmem:[#allocation7] sm:$0xf]
        %v286 = vlaneseq
        %v287 = vshrl.u32 %v286, 7
        %v288 = vsub.s32 0, %v287
        %v289 = vrot.slane %v284, %v288
        %v290 = vlaneseq
        %v291 = vshrl.u32 %v290, 7
        %v292 = vsub.s32 1, %v291
        %v293 = vrot.slane %v284, %v292
        %v294 = vlaneseq
        %v295 = vshrl.u32 %v294, 7
        %v296 = vsub.s32 2, %v295
        %v297 = vrot.slane %v284, %v296
        %v298 = vlaneseq
        %v299 = vshrl.u32 %v298, 7
        %v300 = vsub.s32 3, %v299
        %v301 = vrot.slane %v284, %v300
        %306 = vmatprep.subr.mxu0 %v281
        %307 = vmatpush1.msra.mxu0 %v280
        %308 = vmatprep.subr.mxu0 %v277
        %309 = vmatpush1.msra.mxu0 %v276
        %310 = vmatprep.subr.mxu0 %v273
        %311 = vmatpush1.msra.mxu0 %v272
        %312 = vmatprep.subr.mxu0 %v269
        %313 = vmatpush1.msra.mxu0 %v268
        %314 = vmatprep.subr.mxu0 %v265
        %315 = vmatpush1.msra.mxu0 %v264
        %316 = vmatprep.subr.mxu0 %v261
        %317 = vmatpush1.msra.mxu0 %v260
        %318 = vmatprep.subr.mxu0 %v257
        %319 = vmatpush1.msra.mxu0 %v256
        %320 = vmatprep.subr.mxu0 %v253
        %321 = vmatpush1.msra.mxu0 %v252
        %322 = vmatprep.subr.mxu0 %v249
        %323 = vmatpush1.msra.mxu0 %v248
        %324 = vmatprep.subr.mxu0 %v245
        %325 = vmatpush1.msra.mxu0 %v244
        %326 = vmatprep.subr.mxu0 %v241
        %327 = vmatpush1.msra.mxu0 %v240
        %328 = vmatprep.subr.mxu0 %v237
        %329 = vmatpush1.msra.mxu0 %v236
        %330 = vmatprep.subr.mxu0 %v233
        %331 = vmatpush1.msra.mxu0 %v232
        %332 = vmatprep.subr.mxu0 %v229
        %333 = vmatpush1.msra.mxu0 %v228
        %334 = vmatprep.subr.mxu0 %v225
        %335 = vmatpush1.msra.mxu0 %v224
        %336 = vmatprep.subr.mxu0 %v221
        %337 = vmatpush1.msra.mxu0 %v220
        %338 = vmatprep.subr.mxu0 0.0
        %339 = vmatpush2.msra.mxu0 0.0
        %340 = vmatprep.subr.mxu0 0.0
        %341 = vmatpush2.msra.mxu0 0.0
        %342 = vmatprep.subr.mxu0 0.0
        %343 = vmatpush2.msra.mxu0 0.0
        %344 = vmatprep.subr.mxu0 0.0
        %345 = vmatpush2.msra.mxu0 0.0
        %346 = vmatprep.subr.mxu0 0.0
        %347 = vmatpush2.msra.mxu0 0.0
        %348 = vmatprep.subr.mxu0 0.0
        %349 = vmatpush2.msra.mxu0 0.0
        %350 = vmatprep.subr.mxu0 0.0
        %351 = vmatpush2.msra.mxu0 0.0
        %352 = vmatprep.subr.mxu0 0.0
        %353 = vmatpush2.msra.mxu0 0.0
        %354 = vmatprep.subr.mxu0 0.0
        %355 = vmatpush2.msra.mxu0 0.0
        %356 = vmatprep.subr.mxu0 0.0
        %357 = vmatpush2.msra.mxu0 0.0
        %358 = vmatprep.subr.mxu0 0.0
        %359 = vmatpush2.msra.mxu0 0.0
        %360 = vmatprep.subr.mxu0 0.0
        %361 = vmatpush2.msra.mxu0 0.0
        %362 = vmatprep.subr.mxu0 0.0
        %363 = vmatpush2.msra.mxu0 0.0
        %364 = vmatprep.subr.mxu0 0.0
        %365 = vmatpush2.msra.mxu0 0.0
        %366 = vmatprep.subr.mxu0 0.0
        %367 = vmatpush2.msra.mxu0 0.0
        %368 = vmatprep.subr.mxu0 0.0
        %369 = vmatpush2.msra.mxu0 0.0
        %370 = vmatprep.mubr.f32.mxu0 0.0
        %371 = vmatmul.mubr.f32.gmra.mxu0 %v218
        %v372 = vpop.f32.mrf.mxu0
        %v373 = vadd.f32 %v289, %v372
        %v374 = vpop.f32.mrf.mxu0
        %v375 = vadd.f32 %v293, %v374
        %376 = vmatprep.mubr.f32.mxu0 0.0
        %377 = vmatmul.mubr.f32.gmra.mxu0 %v219
        %v378 = vpop.f32.mrf.mxu0
        %v379 = vadd.f32 %v289, %v378
        %v380 = vpop.f32.mrf.mxu0
        %v381 = vadd.f32 %v293, %v380
        %382 = vdwg.mxu0
        %383 = vmatprep.subr.mxu0 %v283
        %384 = vmatpush1.msra.mxu0 %v282
        %385 = vmatprep.subr.mxu0 %v279
        %386 = vmatpush1.msra.mxu0 %v278
        %387 = vmatprep.subr.mxu0 %v275
        %388 = vmatpush1.msra.mxu0 %v274
        %389 = vmatprep.subr.mxu0 %v271
        %390 = vmatpush1.msra.mxu0 %v270
        %391 = vmatprep.subr.mxu0 %v267
        %392 = vmatpush1.msra.mxu0 %v266
        %393 = vmatprep.subr.mxu0 %v263
        %394 = vmatpush1.msra.mxu0 %v262
        %395 = vmatprep.subr.mxu0 %v259
        %396 = vmatpush1.msra.mxu0 %v258
        %397 = vmatprep.subr.mxu0 %v255
        %398 = vmatpush1.msra.mxu0 %v254
        %399 = vmatprep.subr.mxu0 %v251
        %400 = vmatpush1.msra.mxu0 %v250
        %401 = vmatprep.subr.mxu0 %v247
        %402 = vmatpush1.msra.mxu0 %v246
        %403 = vmatprep.subr.mxu0 %v243
        %404 = vmatpush1.msra.mxu0 %v242
        %405 = vmatprep.subr.mxu0 %v239
        %406 = vmatpush1.msra.mxu0 %v238
        %407 = vmatprep.subr.mxu0 %v235
        %408 = vmatpush1.msra.mxu0 %v234
        %409 = vmatprep.subr.mxu0 %v231
        %410 = vmatpush1.msra.mxu0 %v230
        %411 = vmatprep.subr.mxu0 %v227
        %412 = vmatpush1.msra.mxu0 %v226
        %413 = vmatprep.subr.mxu0 %v223
        %414 = vmatpush1.msra.mxu0 %v222
        %415 = vmatprep.subr.mxu0 0.0
        %416 = vmatpush2.msra.mxu0 0.0
        %417 = vmatprep.subr.mxu0 0.0
        %418 = vmatpush2.msra.mxu0 0.0
        %419 = vmatprep.subr.mxu0 0.0
        %420 = vmatpush2.msra.mxu0 0.0
        %421 = vmatprep.subr.mxu0 0.0
        %422 = vmatpush2.msra.mxu0 0.0
        %423 = vmatprep.subr.mxu0 0.0
        %424 = vmatpush2.msra.mxu0 0.0
        %425 = vmatprep.subr.mxu0 0.0
        %426 = vmatpush2.msra.mxu0 0.0
        %427 = vmatprep.subr.mxu0 0.0
        %428 = vmatpush2.msra.mxu0 0.0
        %429 = vmatprep.subr.mxu0 0.0
        %430 = vmatpush2.msra.mxu0 0.0
        %431 = vmatprep.subr.mxu0 0.0
        %432 = vmatpush2.msra.mxu0 0.0
        %433 = vmatprep.subr.mxu0 0.0
        %434 = vmatpush2.msra.mxu0 0.0
        %435 = vmatprep.subr.mxu0 0.0
        %436 = vmatpush2.msra.mxu0 0.0
        %437 = vmatprep.subr.mxu0 0.0
        %438 = vmatpush2.msra.mxu0 0.0
        %439 = vmatprep.subr.mxu0 0.0
        %440 = vmatpush2.msra.mxu0 0.0
        %441 = vmatprep.subr.mxu0 0.0
        %442 = vmatpush2.msra.mxu0 0.0
        %443 = vmatprep.subr.mxu0 0.0
        %444 = vmatpush2.msra.mxu0 0.0
        %445 = vmatprep.subr.mxu0 0.0
        %446 = vmatpush2.msra.mxu0 0.0
        %447 = vmatprep.mubr.f32.mxu0 0.0
        %448 = vmatmul.mubr.f32.gmra.mxu0 %v218
        %v449 = vpop.f32.mrf.mxu0
        %v450 = vadd.f32 %v297, %v449
        %v451 = vpop.f32.mrf.mxu0
        %v452 = vadd.f32 %v301, %v451
        %453 = vmatprep.mubr.f32.mxu0 0.0
        %454 = vmatmul.mubr.f32.gmra.mxu0 %v219
        %v455 = vpop.f32.mrf.mxu0
        %v456 = vadd.f32 %v297, %v455
        %v457 = vpop.f32.mrf.mxu0
        %v458 = vadd.f32 %v301, %v457
        %459 = vdwg.mxu0
        %460 = vst [vmem:[%s215] sm:$0xff] %v373
        %461 = vst [vmem:[%s215 + $0x8] sm:$0xff] %v375
        %462 = vst [vmem:[%s215 + $0x10] sm:$0xff] %v450
        %463 = vst [vmem:[%s215 + $0x18] sm:$0xff] %v452
        %464 = vst [vmem:[%s215 + $0x20] sm:$0xff] %v379
        %465 = vst [vmem:[%s215 + $0x28] sm:$0xff] %v381
        %466 = vst [vmem:[%s215 + $0x30] sm:$0xff] %v456
        %467 = vst [vmem:[%s215 + $0x38] sm:$0xff] %v458
        %s468 = sand.u32 %s97, 1
        %s469 = scalar_lea.sflag [#allocation4], %s468
        %s470 = sand.u32 %s97, 1
        %s471 = smul.addr %s470, 64
        %s472 = scalar_lea.vmem [#allocation8], %s471
        // Predicated region
        $region45: #{tpu_custom_call.1} parent=31 // pred_check
          %p473 = pneg %p107
        $region46: #{tpu_custom_call.1} parent=31 // pred_check_branch
          %475 = sbr.rel (%p473) target = $region48
        $region47: #{tpu_custom_call.1} parent=31 // pred_region
          %s476 = smul.u32 2, %s21
          %s478 = ssub.s32 1024, 1024
          %479 = vsyncadd %s469, %s478
          %s480 = smul.addr %s476, 4
          %s481 = smul.addr %s480, 128
          %s482 = scalar_lea.hbm %s3, %s481
          %s483 = sshll.u32 %s472, 4
          %s484 = int_to_ptr.vmem [resolvable:$true] %s483
          %489 = dma.vmem_to_hbm [thread:$0]  %s484, 1024, %s482, %s469, 512, 512, 32
        $region48: #{tpu_custom_call.1} parent=31 // pred_fallthru
          _
      $region32: #{tpu_custom_call.1} parent=5 // pred_fallthru
        _
      %p490 = scmp.le.s32.totalorder 2, %s16
      // Predicated region
      $region49: #{tpu_custom_call.1} parent=5 // pred_check
        %p491 = pneg %p490
      $region50: #{tpu_custom_call.1} parent=5 // pred_check_branch
        %493 = sbr.rel (%p491) target = $region52
      $region51: #{tpu_custom_call.1} parent=5 // pred_region
        %s494 = ssub.s32 %s16, 2
        // Predicated region
        $region53: #{tpu_custom_call.1} parent=51 // pred_check
          %p495 = pneg %p113
        $region54: #{tpu_custom_call.1} parent=51 // pred_check_branch
          %497 = sbr.rel (%p495) target = $region56
        $region55: #{tpu_custom_call.1} parent=51 // pred_region
          %s498 = sand.u32 %s98, 1
          %s499 = scalar_lea.sflag [#allocation4], %s498
          %s500 = sand.u32 %s98, 1
          %s501 = smul.addr %s500, 64
          %s502 = scalar_lea.vmem [#allocation8], %s501
          %503 = dma.done %s499, 1024
        $region56: #{tpu_custom_call.1} parent=51 // pred_fallthru
          _
      $region52: #{tpu_custom_call.1} parent=5 // pred_fallthru
        _
    $region6: #{tpu_custom_call.1} parent=1 // loop_footer
      %s20 = sadd.s32 1, %s16
    $region7: #{tpu_custom_call.1} parent=1 // loop_footer_branch
      %15 = sbr.rel target = $region3
    $region8: #{tpu_custom_call.1} parent=1 // loop_exit
      _
    %504 = vsyncpa [#allocation3], 1
    %s505 = scalar_lea.sflag [#allocation3], 1
    %506 = vsyncpa %s505, 1
    %507 = vsyncpa [#allocation6], 1
    %508 = vsyncpa [#allocation4], 1
    %s509 = scalar_lea.sflag [#allocation4], 1
    %510 = vsyncpa %s509, 1

// kernel: tpu_custom_call.1
$region0: #{tpu_custom_call.1}
  #allocation0 [shape = 'u32[]', space=smem, size = 0x4, offset = 0x4, fixed_abs, tag = 'smem constant byte address 0x4 - core index']
  #allocation1 [shape = 'u32[144,128]{1,0:T(1,128)}', space=vmem, size = 0x12000, scoped, tag = 'internal scratch']
  %s0 = inlined_call_operand.hbm [shape: f32[32,128], index: 0, kind: input, shape index: {}]
  %s1 = inlined_call_operand.hbm [shape: f32[128,512], index: 1, kind: input, shape index: {}]
  %s2 = inlined_call_operand.hbm [shape: f32[1,512], index: 2, kind: input, shape index: {}]
  %s3 = inlined_call_operand.hbm [shape: f32[32,512], index: 3, kind: output, shape index: {}]
  %s4 = sld [smem:[#allocation0]]
  $region57: #{tpu_custom_call.1} parent=0
    _
  %s6 = ssub.s32 1, %s4
  %s7 = scalar_select 0, %s6, %s4
  $region1: #{tpu_custom_call.1} parent=0
    #allocation2 [shape = 'u8[16384]{0}', space=vmem, size = 0x4000, scoped, tag = 'input window, operand 0']
    #allocation3 [shape = 's32[2]{0}', space=sflag, size = 0x8, scoped, tag = 'scoped memory for tpu_custom_call.1']
    #allocation4 [shape = 's32[2]{0}', space=sflag, size = 0x8, scoped, tag = 'scoped memory for tpu_custom_call.1']
    #allocation5 [shape = 'u8[262144]{0}', space=vmem, size = 0x40000, scoped, tag = 'input window, operand 1, single buffered']
    #allocation6 [shape = 's32[1]{0}', space=sflag, size = 0x4, scoped, tag = 'scoped memory for tpu_custom_call.1']
    #allocation7 [shape = 'u8[2048]{0}', space=vmem, size = 0x800, scoped, tag = 'input window, operand 2, single buffered']
    #allocation8 [shape = 'u8[65536]{0}', space=vmem, size = 0x10000, scoped, tag = 'output window, operand 0']
    %8 = vsyncpa [#allocation3], 0
    %s9 = scalar_lea.sflag [#allocation3], 1
    %10 = vsyncpa %s9, 0
    %11 = vsyncpa [#allocation6], 0
    %12 = vsyncpa [#allocation4], 0
    %s13 = scalar_lea.sflag [#allocation4], 1
    %14 = vsyncpa %s13, 0
    loop: start=0, step=1, limit=4
    $region2: #{tpu_custom_call.1} parent=1 // loop_pre_header
      _
    $region3: #{tpu_custom_call.1} parent=1 // loop_header
      %s16 = sphi 0, %s20
      %p17 = scmp.ge.s32.totalorder %s16, 4
      %s26 = sphi 0, %s28
      %s29 = sphi 0, %s26
      %s30 = sphi 0, %s29
      %s46 = sphi 0, %s30
      %s50 = sphi 0, %s50
      %s52 = sphi 0, %s50
      %s53 = sphi 0, %s52
      %s67 = sphi 0, %s53
      %s71 = sphi 0, %s71
      %s73 = sphi 0, %s71
      %s74 = sphi 0, %s73
      %s88 = sphi 0, %s74
      %s94 = sphi 0, %s96
      %s97 = sphi 0, %s94
      %s98 = sphi 0, %s97
      %s114 = sphi 0, %s98
    $region4: #{tpu_custom_call.1} parent=1 // loop_header_branch
      %19 = sbr.rel (%p17) target = $region8
    $region5: #{tpu_custom_call.1} parent=1 // loop_body
      %s21 = ssub.s32 %s16, 1
      %s22 = ssub.s32 %s16, 2
      %s23 = sadd.s32 %s16, 1
      %s24 = ssub.s32 %s16, %s23
      %p25 = scmp.eq.s32.totalorder %s24, 0
      %s27 = sadd.s32 %s26, 1
      %s28 = scalar_select %p25, %s26, %s27
      %p31 = pneg %p25
      %p32 = scmp.eq.s32.totalorder %s16, 1
      %p33 = por %p31, %p32
      %p34 = scmp.ne.s32.totalorder %s26, %s29
      %p35 = scmp.eq.s32.totalorder %s16, 0
      %p36 = por %p34, %p35
      %p37 = scmp.ne.s32.totalorder %s26, %s29
      %p38 = scmp.eq.s32.totalorder %s21, 1
      %p39 = por %p37, %p38
      %p40 = scmp.ne.s32.totalorder %s29, %s30
      %p41 = scmp.eq.s32.totalorder %s21, 0
      %p42 = por %p40, %p41
      %p43 = scmp.ne.s32.totalorder %s29, %s30
      %p44 = scmp.eq.s32.totalorder %s22, 1
      %p45 = por %p43, %p44
      %p47 = scmp.ne.s32.totalorder %s30, %s46
      %p48 = scmp.eq.s32.totalorder %s22, 0
      %p49 = por %p47, %p48
      %s51 = sadd.s32 %s50, 1
      %p54 = scmp.eq.s32.totalorder %s16, 1
      %p55 = scmp.ne.s32.totalorder %s50, %s52
      %p56 = scmp.eq.s32.totalorder %s16, 0
      %p57 = por %p55, %p56
      %p58 = scmp.ne.s32.totalorder %s50, %s52
      %p59 = scmp.eq.s32.totalorder %s21, 1
      %p60 = por %p58, %p59
      %p61 = scmp.ne.s32.totalorder %s52, %s53
      %p62 = scmp.eq.s32.totalorder %s21, 0
      %p63 = por %p61, %p62
      %p64 = scmp.ne.s32.totalorder %s52, %s53
      %p65 = scmp.eq.s32.totalorder %s22, 1
      %p66 = por %p64, %p65
      %p68 = scmp.ne.s32.totalorder %s53, %s67
      %p69 = scmp.eq.s32.totalorder %s22, 0
      %p70 = por %p68, %p69
      %s72 = sadd.s32 %s71, 1
      %p75 = scmp.eq.s32.totalorder %s16, 1
      %p76 = scmp.ne.s32.totalorder %s71, %s73
      %p77 = scmp.eq.s32.totalorder %s16, 0
      %p78 = por %p76, %p77
      %p79 = scmp.ne.s32.totalorder %s71, %s73
      %p80 = scmp.eq.s32.totalorder %s21, 1
      %p81 = por %p79, %p80
      %p82 = scmp.ne.s32.totalorder %s73, %s74
      %p83 = scmp.eq.s32.totalorder %s21, 0
      %p84 = por %p82, %p83
      %p85 = scmp.ne.s32.totalorder %s73, %s74
      %p86 = scmp.eq.s32.totalorder %s22, 1
      %p87 = por %p85, %p86
      %p89 = scmp.ne.s32.totalorder %s74, %s88
      %p90 = scmp.eq.s32.totalorder %s22, 0
      %p91 = por %p89, %p90
      %s92 = ssub.s32 %s16, %s23
      %p93 = scmp.eq.s32.totalorder %s92, 0
      %s95 = sadd.s32 %s94, 1
      %s96 = scalar_select %p93, %s94, %s95
      %p99 = pneg %p93
      %p100 = scmp.eq.s32.totalorder %s16, 1
      %p101 = por %p99, %p100
      %p102 = scmp.ne.s32.totalorder %s94, %s97
      %p103 = scmp.eq.s32.totalorder %s16, 0
      %p104 = por %p102, %p103
      %p105 = scmp.ne.s32.totalorder %s94, %s97
      %p106 = scmp.eq.s32.totalorder %s21, 1
      %p107 = por %p105, %p106
      %p108 = scmp.ne.s32.totalorder %s97, %s98
      %p109 = scmp.eq.s32.totalorder %s21, 0
      %p110 = por %p108, %p109
      %p111 = scmp.ne.s32.totalorder %s97, %s98
      %p112 = scmp.eq.s32.totalorder %s22, 1
      %p113 = por %p111, %p112
      %p115 = scmp.ne.s32.totalorder %s98, %s114
      %p116 = scmp.eq.s32.totalorder %s22, 0
      %p117 = por %p115, %p116
      %p118 = scmp.le.s32.totalorder 1, %s16
      %p119 = scmp.lt.s32.totalorder %s16, 3
      %p120 = pnand %p118, %p119
      %p121 = pneg %p120
      // Predicated region
      $region9: #{tpu_custom_call.1} parent=5 // pred_check
        _
      $region10: #{tpu_custom_call.1} parent=5 // pred_check_branch
        %123 = sbr.rel (%p120) target = $region12
      $region11: #{tpu_custom_call.1} parent=5 // pred_region
        %s124 = ssub.s32 %s16, 1
        // Predicated region
        $region13: #{tpu_custom_call.1} parent=11 // pred_check
          %p125 = pneg %p63
        $region14: #{tpu_custom_call.1} parent=11 // pred_check_branch
          %127 = sbr.rel (%p125) target = $region16
        $region15: #{tpu_custom_call.1} parent=11 // pred_region
          %s129 = ssub.s32 8192, 8192
          %130 = vsyncadd [#allocation6], %s129
          %s131 = sshll.u32 [#allocation5], 4
          %s132 = int_to_ptr.vmem [resolvable:$true] %s131
          %137 = dma.hbm_to_vmem [thread:$0]  %s1, 8192, %s132, [#allocation6], 512, 512, 32
        $region16: #{tpu_custom_call.1} parent=11 // pred_fallthru
          _
        // Predicated region
        $region17: #{tpu_custom_call.1} parent=11 // pred_check
          %p138 = pneg %p84
        $region18: #{tpu_custom_call.1} parent=11 // pred_check_branch
          %140 = sbr.rel (%p138) target = $region20
        $region19: #{tpu_custom_call.1} parent=11 // pred_region
          %s142 = ssub.s32 64, 64
          %143 = vsyncadd [#allocation6], %s142
          %s145 = sshll.u32 [#allocation7], 4
          %s146 = int_to_ptr.vmem [resolvable:$true] %s145
          %148 = dma.hbm_to_vmem [thread:$0]  %s2, 64, %s146, [#allocation6]
        $region20: #{tpu_custom_call.1} parent=11 // pred_fallthru
          _
      $region12: #{tpu_custom_call.1} parent=5 // pred_fallthru
        _
      %p149 = scmp.lt.s32.totalorder %s16, 2
      // Predicated region
      $region21: #{tpu_custom_call.1} parent=5 // pred_check
        %p150 = pneg %p149
      $region22: #{tpu_custom_call.1} parent=5 // pred_check_branch
        %152 = sbr.rel (%p150) target = $region24
      $region23: #{tpu_custom_call.1} parent=5 // pred_region
        // Predicated region
        $region25: #{tpu_custom_call.1} parent=23 // pred_check
          %p153 = pneg %p36
        $region26: #{tpu_custom_call.1} parent=23 // pred_check_branch
          %155 = sbr.rel (%p153) target = $region28
        $region27: #{tpu_custom_call.1} parent=23 // pred_region
          %s156 = sand.u32 %s26, 1
          %s157 = scalar_lea.sflag [#allocation3], %s156
          %s158 = sand.u32 %s26, 1
          %s159 = smul.addr %s158, 16
          %s160 = scalar_lea.vmem [#allocation2], %s159
          %s161 = smul.u32 2, %s16
          %s163 = ssub.s32 256, 256
          %164 = vsyncadd %s157, %s163
          %s165 = smul.addr %s161, 128
          %s166 = scalar_lea.hbm %s0, %s165
          %s167 = sshll.u32 %s160, 4
          %s168 = int_to_ptr.vmem [resolvable:$true] %s167
          %173 = dma.hbm_to_vmem [thread:$0]  %s166, 256, %s168, %s157, 128, 128, 8
        $region28: #{tpu_custom_call.1} parent=23 // pred_fallthru
          _
      $region24: #{tpu_custom_call.1} parent=5 // pred_fallthru
        _
      %p174 = scmp.le.s32.totalorder 1, %s16
      %p175 = scmp.lt.s32.totalorder %s16, 3
      %p176 = pnand %p174, %p175
      %p177 = pneg %p176
      // Predicated region
      $region29: #{tpu_custom_call.1} parent=5 // pred_check
        _
      $region30: #{tpu_custom_call.1} parent=5 // pred_check_branch
        %179 = sbr.rel (%p176) target = $region32
      $region31: #{tpu_custom_call.1} parent=5 // pred_region
        %s180 = ssub.s32 %s16, 1
        %s181 = sand.u32 %s29, 1
        %s182 = scalar_lea.sflag [#allocation3], %s181
        %s183 = sand.u32 %s29, 1
        %s184 = smul.addr %s183, 16
        %s185 = scalar_lea.vmem [#allocation2], %s184
        // Predicated region
        $region33: #{tpu_custom_call.1} parent=31 // pred_check
          %p186 = pneg %p42
        $region34: #{tpu_custom_call.1} parent=31 // pred_check_branch
          %188 = sbr.rel (%p186) target = $region36
        $region35: #{tpu_custom_call.1} parent=31 // pred_region
          %189 = dma.done %s182, 256
        $region36: #{tpu_custom_call.1} parent=31 // pred_fallthru
          _
        // Predicated region
        $region37: #{tpu_custom_call.1} parent=31 // pred_check
          %p190 = pneg %p63
        $region38: #{tpu_custom_call.1} parent=31 // pred_check_branch
          %192 = sbr.rel (%p190) target = $region40
        $region39: #{tpu_custom_call.1} parent=31 // pred_region
          %193 = dma.done [#allocation6], 8192
        $region40: #{tpu_custom_call.1} parent=31 // pred_fallthru
          _
        // Predicated region
        $region41: #{tpu_custom_call.1} parent=31 // pred_check
          %p194 = pneg %p84
        $region42: #{tpu_custom_call.1} parent=31 // pred_check_branch
          %196 = sbr.rel (%p194) target = $region44
        $region43: #{tpu_custom_call.1} parent=31 // pred_region
          %197 = dma.done [#allocation6], 64
        $region44: #{tpu_custom_call.1} parent=31 // pred_fallthru
          _
        %s198 = sand.u32 %s29, 1
        %s199 = scalar_lea.sflag [#allocation3], %s198
        %s200 = sand.u32 %s29, 1
        %s201 = smul.addr %s200, 16
        %s202 = scalar_lea.vmem [#allocation2], %s201
        %p203 = pneg %p42
        %p204 = pneg %p39
        %p205 = pneg %p63
        %p206 = pneg %p60
        %p207 = pneg %p84
        %p208 = pneg %p81
        %p209 = pneg %p110
        %p210 = pneg %p107
        %s211 = sand.u32 %s97, 1
        %s212 = scalar_lea.sflag [#allocation4], %s211
        %s213 = sand.u32 %s97, 1
        %s214 = smul.addr %s213, 64
        %s215 = scalar_lea.vmem [#allocation8], %s214
        %s216 = smul.u32 2, %s21
        %s217 = smul.u32 2, %s21
        %v218 = vld [vmem:[%s185] sm:$0xff]
        %v219 = vld [vmem:[%s185 + $0x8] sm:$0xff]
        %v220 = vld [vmem:[#allocation5] sm:$0xff]
        %v221 = vld [vmem:[#allocation5 + $0x8] sm:$0xff]
        %v222 = vld [vmem:[#allocation5 + $0x10] sm:$0xff]
        %v223 = vld [vmem:[#allocation5 + $0x18] sm:$0xff]
        %v224 = vld [vmem:[#allocation5 + $0x20] sm:$0xff]
        %v225 = vld [vmem:[#allocation5 + $0x28] sm:$0xff]
        %v226 = vld [vmem:[#allocation5 + $0x30] sm:$0xff]
        %v227 = vld [vmem:[#allocation5 + $0x38] sm:$0xff]
        %v228 = vld [vmem:[#allocation5 + $0x40] sm:$0xff]
        %v229 = vld [vmem:[#allocation5 + $0x48] sm:$0xff]
        %v230 = vld [vmem:[#allocation5 + $0x50] sm:$0xff]
        %v231 = vld [vmem:[#allocation5 + $0x58] sm:$0xff]
        %v232 = vld [vmem:[#allocation5 + $0x60] sm:$0xff]
        %v233 = vld [vmem:[#allocation5 + $0x68] sm:$0xff]
        %v234 = vld [vmem:[#allocation5 + $0x70] sm:$0xff]
        %v235 = vld [vmem:[#allocation5 + $0x78] sm:$0xff]
        %v236 = vld [vmem:[#allocation5 + $0x80] sm:$0xff]
        %v237 = vld [vmem:[#allocation5 + $0x88] sm:$0xff]
        %v238 = vld [vmem:[#allocation5 + $0x90] sm:$0xff]
        %v239 = vld [vmem:[#allocation5 + $0x98] sm:$0xff]
        %v240 = vld [vmem:[#allocation5 + $0xa0] sm:$0xff]
        %v241 = vld [vmem:[#allocation5 + $0xa8] sm:$0xff]
        %v242 = vld [vmem:[#allocation5 + $0xb0] sm:$0xff]
        %v243 = vld [vmem:[#allocation5 + $0xb8] sm:$0xff]
        %v244 = vld [vmem:[#allocation5 + $0xc0] sm:$0xff]
        %v245 = vld [vmem:[#allocation5 + $0xc8] sm:$0xff]
        %v246 = vld [vmem:[#allocation5 + $0xd0] sm:$0xff]
        %v247 = vld [vmem:[#allocation5 + $0xd8] sm:$0xff]
        %v248 = vld [vmem:[#allocation5 + $0xe0] sm:$0xff]
        %v249 = vld [vmem:[#allocation5 + $0xe8] sm:$0xff]
        %v250 = vld [vmem:[#allocation5 + $0xf0] sm:$0xff]
        %v251 = vld [vmem:[#allocation5 + $0xf8] sm:$0xff]
        %v252 = vld [vmem:[#allocation5 + $0x100] sm:$0xff]
        %v253 = vld [vmem:[#allocation5 + $0x108] sm:$0xff]
        %v254 = vld [vmem:[#allocation5 + $0x110] sm:$0xff]
        %v255 = vld [vmem:[#allocation5 + $0x118] sm:$0xff]
        %v256 = vld [vmem:[#allocation5 + $0x120] sm:$0xff]
        %v257 = vld [vmem:[#allocation5 + $0x128] sm:$0xff]
        %v258 = vld [vmem:[#allocation5 + $0x130] sm:$0xff]
        %v259 = vld [vmem:[#allocation5 + $0x138] sm:$0xff]
        %v260 = vld [vmem:[#allocation5 + $0x140] sm:$0xff]
        %v261 = vld [vmem:[#allocation5 + $0x148] sm:$0xff]
        %v262 = vld [vmem:[#allocation5 + $0x150] sm:$0xff]
        %v263 = vld [vmem:[#allocation5 + $0x158] sm:$0xff]
        %v264 = vld [vmem:[#allocation5 + $0x160] sm:$0xff]
        %v265 = vld [vmem:[#allocation5 + $0x168] sm:$0xff]
        %v266 = vld [vmem:[#allocation5 + $0x170] sm:$0xff]
        %v267 = vld [vmem:[#allocation5 + $0x178] sm:$0xff]
        %v268 = vld [vmem:[#allocation5 + $0x180] sm:$0xff]
        %v269 = vld [vmem:[#allocation5 + $0x188] sm:$0xff]
        %v270 = vld [vmem:[#allocation5 + $0x190] sm:$0xff]
        %v271 = vld [vmem:[#allocation5 + $0x198] sm:$0xff]
        %v272 = vld [vmem:[#allocation5 + $0x1a0] sm:$0xff]
        %v273 = vld [vmem:[#allocation5 + $0x1a8] sm:$0xff]
        %v274 = vld [vmem:[#allocation5 + $0x1b0] sm:$0xff]
        %v275 = vld [vmem:[#allocation5 + $0x1b8] sm:$0xff]
        %v276 = vld [vmem:[#allocation5 + $0x1c0] sm:$0xff]
        %v277 = vld [vmem:[#allocation5 + $0x1c8] sm:$0xff]
        %v278 = vld [vmem:[#allocation5 + $0x1d0] sm:$0xff]
        %v279 = vld [vmem:[#allocation5 + $0x1d8] sm:$0xff]
        %v280 = vld [vmem:[#allocation5 + $0x1e0] sm:$0xff]
        %v281 = vld [vmem:[#allocation5 + $0x1e8] sm:$0xff]
        %v282 = vld [vmem:[#allocation5 + $0x1f0] sm:$0xff]
        %v283 = vld [vmem:[#allocation5 + $0x1f8] sm:$0xff]
        %v284 = vld [vmem:[#allocation7] sm:$0xf]
        %v286 = vlaneseq
        %v287 = vshrl.u32 %v286, 7
        %v288 = vsub.s32 0, %v287
        %v289 = vrot.slane %v284, %v288
        %v290 = vlaneseq
        %v291 = vshrl.u32 %v290, 7
        %v292 = vsub.s32 1, %v291
        %v293 = vrot.slane %v284, %v292
        %v294 = vlaneseq
        %v295 = vshrl.u32 %v294, 7
        %v296 = vsub.s32 2, %v295
        %v297 = vrot.slane %v284, %v296
        %v298 = vlaneseq
        %v299 = vshrl.u32 %v298, 7
        %v300 = vsub.s32 3, %v299
        %v301 = vrot.slane %v284, %v300
        %306 = vmatprep.subr.mxu0 %v281
        %307 = vmatpush1.msra.mxu0 %v280
        %308 = vmatprep.subr.mxu0 %v277
        %309 = vmatpush1.msra.mxu0 %v276
        %310 = vmatprep.subr.mxu0 %v273
        %311 = vmatpush1.msra.mxu0 %v272
        %312 = vmatprep.subr.mxu0 %v269
        %313 = vmatpush1.msra.mxu0 %v268
        %314 = vmatprep.subr.mxu0 %v265
        %315 = vmatpush1.msra.mxu0 %v264
        %316 = vmatprep.subr.mxu0 %v261
        %317 = vmatpush1.msra.mxu0 %v260
        %318 = vmatprep.subr.mxu0 %v257
        %319 = vmatpush1.msra.mxu0 %v256
        %320 = vmatprep.subr.mxu0 %v253
        %321 = vmatpush1.msra.mxu0 %v252
        %322 = vmatprep.subr.mxu0 %v249
        %323 = vmatpush1.msra.mxu0 %v248
        %324 = vmatprep.subr.mxu0 %v245
        %325 = vmatpush1.msra.mxu0 %v244
        %326 = vmatprep.subr.mxu0 %v241
        %327 = vmatpush1.msra.mxu0 %v240
        %328 = vmatprep.subr.mxu0 %v237
        %329 = vmatpush1.msra.mxu0 %v236
        %330 = vmatprep.subr.mxu0 %v233
        %331 = vmatpush1.msra.mxu0 %v232
        %332 = vmatprep.subr.mxu0 %v229
        %333 = vmatpush1.msra.mxu0 %v228
        %334 = vmatprep.subr.mxu0 %v225
        %335 = vmatpush1.msra.mxu0 %v224
        %336 = vmatprep.subr.mxu0 %v221
        %337 = vmatpush1.msra.mxu0 %v220
        %338 = vmatprep.subr.mxu0 0.0
        %339 = vmatpush2.msra.mxu0 0.0
        %340 = vmatprep.subr.mxu0 0.0
        %341 = vmatpush2.msra.mxu0 0.0
        %342 = vmatprep.subr.mxu0 0.0
        %343 = vmatpush2.msra.mxu0 0.0
        %344 = vmatprep.subr.mxu0 0.0
        %345 = vmatpush2.msra.mxu0 0.0
        %346 = vmatprep.subr.mxu0 0.0
        %347 = vmatpush2.msra.mxu0 0.0
        %348 = vmatprep.subr.mxu0 0.0
        %349 = vmatpush2.msra.mxu0 0.0
        %350 = vmatprep.subr.mxu0 0.0
        %351 = vmatpush2.msra.mxu0 0.0
        %352 = vmatprep.subr.mxu0 0.0
        %353 = vmatpush2.msra.mxu0 0.0
        %354 = vmatprep.subr.mxu0 0.0
        %355 = vmatpush2.msra.mxu0 0.0
        %356 = vmatprep.subr.mxu0 0.0
        %357 = vmatpush2.msra.mxu0 0.0
        %358 = vmatprep.subr.mxu0 0.0
        %359 = vmatpush2.msra.mxu0 0.0
        %360 = vmatprep.subr.mxu0 0.0
        %361 = vmatpush2.msra.mxu0 0.0
        %362 = vmatprep.subr.mxu0 0.0
        %363 = vmatpush2.msra.mxu0 0.0
        %364 = vmatprep.subr.mxu0 0.0
        %365 = vmatpush2.msra.mxu0 0.0
        %366 = vmatprep.subr.mxu0 0.0
        %367 = vmatpush2.msra.mxu0 0.0
        %368 = vmatprep.subr.mxu0 0.0
        %369 = vmatpush2.msra.mxu0 0.0
        %370 = vmatprep.mubr.f32.mxu0 0.0
        %371 = vmatmul.mubr.f32.gmra.mxu0 %v218
        %v372 = vpop.f32.mrf.mxu0
        %v373 = vadd.f32 %v289, %v372
        %v374 = vpop.f32.mrf.mxu0
        %v375 = vadd.f32 %v293, %v374
        %376 = vmatprep.mubr.f32.mxu0 0.0
        %377 = vmatmul.mubr.f32.gmra.mxu0 %v219
        %v378 = vpop.f32.mrf.mxu0
        %v379 = vadd.f32 %v289, %v378
        %v380 = vpop.f32.mrf.mxu0
        %v381 = vadd.f32 %v293, %v380
        %382 = vdwg.mxu0
        %383 = vmatprep.subr.mxu0 %v283
        %384 = vmatpush1.msra.mxu0 %v282
        %385 = vmatprep.subr.mxu0 %v279
        %386 = vmatpush1.msra.mxu0 %v278
        %387 = vmatprep.subr.mxu0 %v275
        %388 = vmatpush1.msra.mxu0 %v274
        %389 = vmatprep.subr.mxu0 %v271
        %390 = vmatpush1.msra.mxu0 %v270
        %391 = vmatprep.subr.mxu0 %v267
        %392 = vmatpush1.msra.mxu0 %v266
        %393 = vmatprep.subr.mxu0 %v263
        %394 = vmatpush1.msra.mxu0 %v262
        %395 = vmatprep.subr.mxu0 %v259
        %396 = vmatpush1.msra.mxu0 %v258
        %397 = vmatprep.subr.mxu0 %v255
        %398 = vmatpush1.msra.mxu0 %v254
        %399 = vmatprep.subr.mxu0 %v251
        %400 = vmatpush1.msra.mxu0 %v250
        %401 = vmatprep.subr.mxu0 %v247
        %402 = vmatpush1.msra.mxu0 %v246
        %403 = vmatprep.subr.mxu0 %v243
        %404 = vmatpush1.msra.mxu0 %v242
        %405 = vmatprep.subr.mxu0 %v239
        %406 = vmatpush1.msra.mxu0 %v238
        %407 = vmatprep.subr.mxu0 %v235
        %408 = vmatpush1.msra.mxu0 %v234
        %409 = vmatprep.subr.mxu0 %v231
        %410 = vmatpush1.msra.mxu0 %v230
        %411 = vmatprep.subr.mxu0 %v227
        %412 = vmatpush1.msra.mxu0 %v226
        %413 = vmatprep.subr.mxu0 %v223
        %414 = vmatpush1.msra.mxu0 %v222
        %415 = vmatprep.subr.mxu0 0.0
        %416 = vmatpush2.msra.mxu0 0.0
        %417 = vmatprep.subr.mxu0 0.0
        %418 = vmatpush2.msra.mxu0 0.0
        %419 = vmatprep.subr.mxu0 0.0
        %420 = vmatpush2.msra.mxu0 0.0
        %421 = vmatprep.subr.mxu0 0.0
        %422 = vmatpush2.msra.mxu0 0.0
        %423 = vmatprep.subr.mxu0 0.0
        %424 = vmatpush2.msra.mxu0 0.0
        %425 = vmatprep.subr.mxu0 0.0
        %426 = vmatpush2.msra.mxu0 0.0
        %427 = vmatprep.subr.mxu0 0.0
        %428 = vmatpush2.msra.mxu0 0.0
        %429 = vmatprep.subr.mxu0 0.0
        %430 = vmatpush2.msra.mxu0 0.0
        %431 = vmatprep.subr.mxu0 0.0
        %432 = vmatpush2.msra.mxu0 0.0
        %433 = vmatprep.subr.mxu0 0.0
        %434 = vmatpush2.msra.mxu0 0.0
        %435 = vmatprep.subr.mxu0 0.0
        %436 = vmatpush2.msra.mxu0 0.0
        %437 = vmatprep.subr.mxu0 0.0
        %438 = vmatpush2.msra.mxu0 0.0
        %439 = vmatprep.subr.mxu0 0.0
        %440 = vmatpush2.msra.mxu0 0.0
        %441 = vmatprep.subr.mxu0 0.0
        %442 = vmatpush2.msra.mxu0 0.0
        %443 = vmatprep.subr.mxu0 0.0
        %444 = vmatpush2.msra.mxu0 0.0
        %445 = vmatprep.subr.mxu0 0.0
        %446 = vmatpush2.msra.mxu0 0.0
        %447 = vmatprep.mubr.f32.mxu0 0.0
        %448 = vmatmul.mubr.f32.gmra.mxu0 %v218
        %v449 = vpop.f32.mrf.mxu0
        %v450 = vadd.f32 %v297, %v449
        %v451 = vpop.f32.mrf.mxu0
        %v452 = vadd.f32 %v301, %v451
        %453 = vmatprep.mubr.f32.mxu0 0.0
        %454 = vmatmul.mubr.f32.gmra.mxu0 %v219
        %v455 = vpop.f32.mrf.mxu0
        %v456 = vadd.f32 %v297, %v455
        %v457 = vpop.f32.mrf.mxu0
        %v458 = vadd.f32 %v301, %v457
        %459 = vdwg.mxu0
        %460 = vst [vmem:[%s215] sm:$0xff] %v373
        %461 = vst [vmem:[%s215 + $0x8] sm:$0xff] %v375
        %462 = vst [vmem:[%s215 + $0x10] sm:$0xff] %v450
        %463 = vst [vmem:[%s215 + $0x18] sm:$0xff] %v452
        %464 = vst [vmem:[%s215 + $0x20] sm:$0xff] %v379
        %465 = vst [vmem:[%s215 + $0x28] sm:$0xff] %v381
        %466 = vst [vmem:[%s215 + $0x30] sm:$0xff] %v456
        %467 = vst [vmem:[%s215 + $0x38] sm:$0xff] %v458
        %s468 = sand.u32 %s97, 1
        %s469 = scalar_lea.sflag [#allocation4], %s468
        %s470 = sand.u32 %s97, 1
        %s471 = smul.addr %s470, 64
        %s472 = scalar_lea.vmem [#allocation8], %s471
        // Predicated region
        $region45: #{tpu_custom_call.1} parent=31 // pred_check
          %p473 = pneg %p107
        $region46: #{tpu_custom_call.1} parent=31 // pred_check_branch
          %475 = sbr.rel (%p473) target = $region48
        $region47: #{tpu_custom_call.1} parent=31 // pred_region
          %s476 = smul.u32 2, %s21
          %s478 = ssub.s32 1024, 1024
          %479 = vsyncadd %s469, %s478
          %s480 = smul.addr %s476, 4
          %s481 = smul.addr %s480, 128
          %s482 = scalar_lea.hbm %s3, %s481
          %s483 = sshll.u32 %s472, 4
          %s484 = int_to_ptr.vmem [resolvable:$true] %s483
          %489 = dma.vmem_to_hbm [thread:$0]  %s484, 1024, %s482, %s469, 512, 512, 32
        $region48: #{tpu_custom_call.1} parent=31 // pred_fallthru
          _
      $region32: #{tpu_custom_call.1} parent=5 // pred_fallthru
        _
      %p490 = scmp.le.s32.totalorder 2, %s16
      // Predicated region
      $region49: #{tpu_custom_call.1} parent=5 // pred_check
        %p491 = pneg %p490
      $region50: #{tpu_custom_call.1} parent=5 // pred_check_branch
        %493 = sbr.rel (%p491) target = $region52
      $region51: #{tpu_custom_call.1} parent=5 // pred_region
        %s494 = ssub.s32 %s16, 2
        // Predicated region
        $region53: #{tpu_custom_call.1} parent=51 // pred_check
          %p495 = pneg %p113
        $region54: #{tpu_custom_call.1} parent=51 // pred_check_branch
          %497 = sbr.rel (%p495) target = $region56
        $region55: #{tpu_custom_call.1} parent=51 // pred_region
          %s498 = sand.u32 %s98, 1
          %s499 = scalar_lea.sflag [#allocation4], %s498
          %s500 = sand.u32 %s98, 1
          %s501 = smul.addr %s500, 64
          %s502 = scalar_lea.vmem [#allocation8], %s501
          %503 = dma.done %s499, 1024
        $region56: #{tpu_custom_call.1} parent=51 // pred_fallthru
          _
      $region52: #{tpu_custom_call.1} parent=5 // pred_fallthru
        _
    $region6: #{tpu_custom_call.1} parent=1 // loop_footer
      %s20 = sadd.s32 1, %s16
    $region7: #{tpu_custom_call.1} parent=1 // loop_footer_branch
      %15 = sbr.rel target = $region3
    $region8: #{tpu_custom_call.1} parent=1 // loop_exit
      _
    %504 = vsyncpa [#allocation3], 1
    %s505 = scalar_lea.sflag [#allocation3], 1
    %506 = vsyncpa %s505, 1
    %507 = vsyncpa [#allocation6], 1
    %508 = vsyncpa [#allocation4], 1
    %s509 = scalar_lea.sflag [#allocation4], 1
    %510 = vsyncpa %s509, 1

</llo_original>
